<compile_context>
chip_gen: v5e
topology: v5e:2x2
jax: 0.10.0
libtpu: 0.0.40
codegen_flags: <defaults>
</compile_context>

<pallas_src>
import functools

import jax
import jax.numpy as jnp
from jax.experimental import pallas as pl
from jax.experimental.pallas import tpu as pltpu

HID = 24        # logical hidden width of the PyTorch module
LANE = 128      # TPU lane width; hidden feature dims are zero-padded to this


def _round_up(n, m):
    return ((n + m - 1) // m) * m


def pack_params(params, d_in, d_out):
    """Pack w1,b1,w2,b2,w3,b3 into one zero-padded (R, 128) f32 slab.

    Row layout (every section starts at an 8-aligned sublane offset):
      [0, d_in_pad)        w1  (first d_in rows / HID cols used)
      [d_in_pad, +8)       b1  (row 0)
      [.., +128)           w2  (rows/cols >= HID are zero)
      [.., +8)             b2
      [.., +128)           w3  (rows >= HID and cols >= d_out are zero)
      [.., +8)             b3
    The zero padding makes the padded lanes of h1/h2 exactly zero, so the padded
    math is numerically identical to the 24-wide PyTorch forward.
    """
    f32 = jnp.float32
    d_in_pad = _round_up(max(d_in, 1), 8)
    w1 = jnp.zeros((d_in_pad, LANE), f32).at[:d_in, :HID].set(params["w1"].astype(f32))
    b1 = jnp.zeros((8, LANE), f32).at[0, :HID].set(params["b1"].reshape(-1).astype(f32))
    w2 = jnp.zeros((LANE, LANE), f32).at[:HID, :HID].set(params["w2"].astype(f32))
    b2 = jnp.zeros((8, LANE), f32).at[0, :HID].set(params["b2"].reshape(-1).astype(f32))
    w3 = jnp.zeros((LANE, LANE), f32).at[:HID, :d_out].set(params["w3"].astype(f32))
    b3 = jnp.zeros((8, LANE), f32).at[0, :d_out].set(params["b3"].reshape(-1).astype(f32))
    slab = jnp.concatenate([w1, b1, w2, b2, w3, b3], axis=0)
    return slab, d_in_pad


def _make_kernel(d_in, d_in_pad, d_out):
    r_b1 = d_in_pad
    r_w2 = d_in_pad + 8
    r_b2 = r_w2 + LANE
    r_w3 = r_b2 + 8
    r_b3 = r_w3 + LANE

    def kernel(x_ref, p_ref, o_ref):
        # `x = x.float()` from the PyTorch forward, done in VMEM (no wrapper HBM pass).
        x = x_ref[...].astype(jnp.float32)
        w1 = p_ref[:d_in, :]
        b1 = p_ref[r_b1:r_b1 + 1, :]
        w2 = p_ref[r_w2:r_w2 + LANE, :]
        b2 = p_ref[r_b2:r_b2 + 1, :]
        w3 = p_ref[r_w3:r_w3 + LANE, :]
        b3 = p_ref[r_b3:r_b3 + 1, :]
        h1 = jnp.maximum(jnp.dot(x, w1, preferred_element_type=jnp.float32) + b1, 0.0)
        h2 = jnp.maximum(jnp.dot(h1, w2, preferred_element_type=jnp.float32) + b2, 0.0)
        out = jnp.dot(h2, w3, preferred_element_type=jnp.float32) + b3
        # Store only the real d_out Q-value columns: tiny masked store, but it cuts
        # HBM write traffic ~64x vs. the old 128-lane padded output + wrapper slice.
        o_ref[...] = out[:, :d_out]
        # TODO(synk): for per-step inference (B<=32), fuse argmax over actions /
        # max_a Q(s',a) here and emit a (TM,1) output to skip the Q-value read-back.

    return kernel


def _choose_tm(B, tm_cap):
    B8 = _round_up(max(B, 1), 8)
    if B8 >= 4096:
        # Two balanced batch blocks so the "parallel" grid axis can feed both v7x
        # TensorCores; on 1-TC chips this costs one extra ~0.35us grid step.
        tm = _round_up(pl.cdiv(B8, 2), 8)
    else:
        # Single grid step: per-step overhead dominates this 720-FLOP/row MLP.
        tm = B8
    return min(tm, tm_cap)


@functools.partial(jax.jit, static_argnames=("d_in", "d_out", "d_in_pad", "tm_cap"))
def dqn_forward(x, slab, *, d_in, d_out, d_in_pad, tm_cap=8192):
    """x: (B, d_in) any float dtype (cast to f32 in-kernel); slab from pack_params."""
    B = x.shape[0]
    TM = _choose_tm(B, tm_cap)
    grid = (pl.cdiv(B, TM),)
    R = slab.shape[0]

    flops = 2 * B * (d_in * HID + HID * HID + HID * d_out)
    bytes_accessed = int(x.size) * x.dtype.itemsize \
        + B * d_out * 4 \
        + R * LANE * 4                          # resident parameter slab (read once)

    return pl.pallas_call(
        _make_kernel(d_in, d_in_pad, d_out),
        out_shape=jax.ShapeDtypeStruct((B, d_out), jnp.float32),
        grid=grid,
        in_specs=[
            pl.BlockSpec((TM, d_in), lambda i: (i, 0)),   # batch-tiled activations
            pl.BlockSpec((R, LANE), lambda i: (0, 0)),    # resident packed parameters
        ],
        out_specs=pl.BlockSpec((TM, d_out), lambda i: (i, 0)),
        compiler_params=pltpu.CompilerParams(
            dimension_semantics=("parallel",),            # shard batch across TCs on v7x
        ),
        cost_estimate=pl.CostEstimate(
            flops=flops, transcendentals=0, bytes_accessed=bytes_accessed),
    )(x, slab)


def init_params(key, input_shape, output_shape, hidden=HID):
    """Deterministic init mimicking PyTorch nn.Linear default (uniform +-1/sqrt(fan_in)).
    Weights stored (in_features, out_features) so each layer is y = x @ W + b."""
    def linear(k, fan_in, fan_out):
        kw, kb = jax.random.split(k)
        bound = 1.0 / (fan_in ** 0.5)
        w = jax.random.uniform(kw, (fan_in, fan_out), jnp.float32, -bound, bound)
        b = jax.random.uniform(kb, (1, fan_out), jnp.float32, -bound, bound)
        return w, b

    k1, k2, k3 = jax.random.split(key, 3)
    w1, b1 = linear(k1, input_shape, hidden)
    w2, b2 = linear(k2, hidden, hidden)
    w3, b3 = linear(k3, hidden, output_shape)
    return {"w1": w1, "b1": b1, "w2": w2, "b2": b2, "w3": w3, "b3": b3}


def _reference(x, params):
    xf = x.astype(jnp.float32)
    h1 = jnp.maximum(xf @ params["w1"] + params["b1"], 0.0)
    h2 = jnp.maximum(h1 @ params["w2"] + params["b2"], 0.0)
    return h2 @ params["w3"] + params["b3"]


if __name__ == "__main__":
    key = jax.random.PRNGKey(0)
    k_params, k_x1, k_x2, k_x3 = jax.random.split(key, 4)

    input_shape, output_shape = 4, 2            # CartPole-like DQN state/action dims
    params = init_params(k_params, input_shape, output_shape)
    slab, d_in_pad = pack_params(params, input_shape, output_shape)

    # Per-step inference batch (grid=(1,), TM=8).
    x_small = jax.random.normal(k_x1, (2, input_shape), jnp.float32)
    out_small = jax.block_until_ready(
        dqn_forward(x_small, slab, d_in=input_shape, d_out=output_shape,
                    d_in_pad=d_in_pad))
    ref_small = _reference(x_small, params)
    assert out_small.shape == (2, output_shape)
    assert jnp.allclose(out_small, ref_small, atol=1e-5, rtol=1e-5)

    # Replay-batch case: still a single grid step (TM = round_up(300, 8) = 304).
    x_big = jax.random.normal(k_x2, (300, input_shape), jnp.float32)
    out_big = jax.block_until_ready(
        dqn_forward(x_big, slab, d_in=input_shape, d_out=output_shape,
                    d_in_pad=d_in_pad))
    ref_big = _reference(x_big, params)
    assert out_big.shape == (300, output_shape)
    assert jnp.allclose(out_big, ref_big, atol=1e-5, rtol=1e-5)

    # Large-batch case exercising the two-block (dual-TC on v7x) path and a ragged
    # last block (B=4100 -> TM=2056, grid=(2,)).
    x_large = jax.random.normal(k_x3, (4100, input_shape), jnp.float32)
    out_large = jax.block_until_ready(
        dqn_forward(x_large, slab, d_in=input_shape, d_out=output_shape,
                    d_in_pad=d_in_pad))
    ref_large = _reference(x_large, params)
    assert out_large.shape == (4100, output_shape)
    assert jnp.allclose(out_large, ref_large, atol=1e-5, rtol=1e-5)

    print("KERNEL_OK")
</pallas_src>

<mosaic_0001>
module attributes {stable_mosaic.version = 11 : i64} {
  func.func @kernel(%arg0: i32, %arg1: memref<8x4xf32, #tpu.memory_space<vmem>>, %arg2: memref<288x128xf32, #tpu.memory_space<vmem>>, %arg3: memref<8x2xf32, #tpu.memory_space<vmem>>) attributes {dimension_semantics = [#tpu.dimension_semantics<parallel>], iteration_bounds = array<i64: 1>, scalar_prefetch = 0 : i64, scratch_operands = 0 : i64, tpu.core_type = #tpu.core_type<tc>, window_params = [{transform_indices = @transform_0, window_bounds = array<i64: 8, 4>}, {pipeline_mode = #tpu.pipeline_mode<synchronous>, transform_indices = @transform_1, window_bounds = array<i64: 288, 128>}, {transform_indices = @transform_2, window_bounds = array<i64: 8, 2>}]} {
    %c0 = arith.constant 0 : index
    %c0_0 = arith.constant 0 : index
    %0 = vector.load %arg1[%c0, %c0_0] : memref<8x4xf32, #tpu.memory_space<vmem>>, vector<8x4xf32>
    %c0_1 = arith.constant 0 : index
    %c0_2 = arith.constant 0 : index
    %1 = vector.load %arg2[%c0_1, %c0_2] : memref<288x128xf32, #tpu.memory_space<vmem>>, vector<4x128xf32>
    %c8 = arith.constant 8 : index
    %c0_3 = arith.constant 0 : index
    %2 = vector.load %arg2[%c8, %c0_3] : memref<288x128xf32, #tpu.memory_space<vmem>>, vector<1x128xf32>
    %c16 = arith.constant 16 : index
    %c0_4 = arith.constant 0 : index
    %3 = vector.load %arg2[%c16, %c0_4] : memref<288x128xf32, #tpu.memory_space<vmem>>, vector<128x128xf32>
    %c144 = arith.constant 144 : index
    %c0_5 = arith.constant 0 : index
    %4 = vector.load %arg2[%c144, %c0_5] : memref<288x128xf32, #tpu.memory_space<vmem>>, vector<1x128xf32>
    %c152 = arith.constant 152 : index
    %c0_6 = arith.constant 0 : index
    %5 = vector.load %arg2[%c152, %c0_6] : memref<288x128xf32, #tpu.memory_space<vmem>>, vector<128x128xf32>
    %c280 = arith.constant 280 : index
    %c0_7 = arith.constant 0 : index
    %6 = vector.load %arg2[%c280, %c0_7] : memref<288x128xf32, #tpu.memory_space<vmem>>, vector<1x128xf32>
    %cst = arith.constant dense<0.000000e+00> : vector<8x128xf32>
    %7 = tpu.matmul %0, %1, %cst {dimension_numbers = #tpu.dot_dimension_numbers<[1], [0], [0], [1], [0, 0, 1, 1], [], []>} : vector<8x4xf32>, vector<4x128xf32>, vector<8x128xf32> -> vector<8x128xf32>
    %8 = vector.broadcast %2 : vector<1x128xf32> to vector<8x128xf32>
    %9 = arith.addf %7, %8 : vector<8x128xf32>
    %cst_8 = arith.constant 0.000000e+00 : f32
    %10 = vector.broadcast %cst_8 : f32 to vector<8x128xf32>
    %11 = arith.maximumf %9, %10 : vector<8x128xf32>
    %cst_9 = arith.constant dense<0.000000e+00> : vector<8x128xf32>
    %12 = tpu.matmul %11, %3, %cst_9 {dimension_numbers = #tpu.dot_dimension_numbers<[1], [0], [0], [1], [0, 0, 1, 1], [], []>} : vector<8x128xf32>, vector<128x128xf32>, vector<8x128xf32> -> vector<8x128xf32>
    %13 = vector.broadcast %4 : vector<1x128xf32> to vector<8x128xf32>
    %14 = arith.addf %12, %13 : vector<8x128xf32>
    %cst_10 = arith.constant 0.000000e+00 : f32
    %15 = vector.broadcast %cst_10 : f32 to vector<8x128xf32>
    %16 = arith.maximumf %14, %15 : vector<8x128xf32>
    %cst_11 = arith.constant dense<0.000000e+00> : vector<8x128xf32>
    %17 = tpu.matmul %16, %5, %cst_11 {dimension_numbers = #tpu.dot_dimension_numbers<[1], [0], [0], [1], [0, 0, 1, 1], [], []>} : vector<8x128xf32>, vector<128x128xf32>, vector<8x128xf32> -> vector<8x128xf32>
    %18 = vector.broadcast %6 : vector<1x128xf32> to vector<8x128xf32>
    %19 = arith.addf %17, %18 : vector<8x128xf32>
    %20 = vector.extract_strided_slice %19 {offsets = [0, 0], sizes = [8, 2], strides = [1, 1]} : vector<8x128xf32> to vector<8x2xf32>
    %c0_12 = arith.constant 0 : index
    %c0_13 = arith.constant 0 : index
    %21 = vector.load %arg3[%c0_12, %c0_13] : memref<8x2xf32, #tpu.memory_space<vmem>>, vector<8x2xf32>
    tpu.vector_store %arg3[%c0_12, %c0_13], %20 {strides = array<i32>} : memref<8x2xf32, #tpu.memory_space<vmem>>, vector<8x2xf32>,
    return
  }
  func.func @transform_0(%arg0: i32) -> (i32, i32) {
    %c0_i32 = arith.constant 0 : i32
    %c0_i32_0 = arith.constant 0 : i32
    return %arg0, %c0_i32 : i32, i32
  }
  func.func @transform_1(%arg0: i32) -> (i32, i32) {
    %c0_i32 = arith.constant 0 : i32
    %c0_i32_0 = arith.constant 0 : i32
    %c0_i32_1 = arith.constant 0 : i32
    return %c0_i32, %c0_i32_0 : i32, i32
  }
  func.func @transform_2(%arg0: i32) -> (i32, i32) {
    %c0_i32 = arith.constant 0 : i32
    %c0_i32_0 = arith.constant 0 : i32
    return %arg0, %c0_i32 : i32, i32
  }
}

</mosaic_0001>

<llo_original>
// kernel: dqn_forward.1
$region0: #{dqn_forward.1}
  #allocation0 [shape = 'u32[]', space=smem, size = 0x4, offset = 0x4, fixed_abs, tag = 'smem constant byte address 0x4 - core index']
  #allocation1 [shape = 'u32[72,128]{1,0:T(1,128)}', space=vmem, size = 0x9000, scoped, tag = 'internal scratch']
  %s0 = inlined_call_operand.hbm [shape: f32[2,4], index: 0, kind: input, shape index: {}]
  %s1 = inlined_call_operand.hbm [shape: f32[288,128], index: 1, kind: input, shape index: {}]
  %s2 = inlined_call_operand.hbm [shape: f32[2,2], index: 2, kind: output, shape index: {}]
  %s3 = sld [smem:[#allocation0]]
  $region26: #{dqn_forward.1} parent=0
    _
  %s5 = ssub.s32 1, %s3
  %s6 = scalar_select 0, %s5, %s3
  $region1: #{dqn_forward.1} parent=0
    #allocation2 [shape = 'u8[4096]{0}', space=vmem, size = 0x1000, scoped, tag = 'input window, operand 0, single buffered']
    #allocation3 [shape = 's32[1]{0}', space=sflag, size = 0x4, scoped, tag = 'scoped memory for dqn_forward.1']
    #allocation4 [shape = 's32[1]{0}', space=sflag, size = 0x4, scoped, tag = 'scoped memory for dqn_forward.1']
    #allocation5 [shape = 'u8[147456]{0}', space=vmem, size = 0x24000, scoped, tag = 'input window, operand 1, single buffered']
    #allocation6 [shape = 's32[1]{0}', space=sflag, size = 0x4, scoped, tag = 'scoped memory for dqn_forward.1']
    #allocation7 [shape = 'u8[4096]{0}', space=vmem, size = 0x1000, scoped, tag = 'output window, operand 0, single buffered']
    %7 = vsyncpa [#allocation3], 0
    %8 = vsyncpa [#allocation6], 0
    %9 = vsyncpa [#allocation4], 0
    // Predicated region
    $region2: #{dqn_forward.1} parent=1 // pred_check
      _
    $region3: #{dqn_forward.1} parent=1 // pred_check_branch
      %11 = sbr.rel (0) target = $region5
    $region4: #{dqn_forward.1} parent=1 // pred_region
      %13 = vsyncadd [#allocation3], 96
      %s14 = sshll.u32 %s0, 4
      %s15 = int_to_ptr.hbm [resolvable:$true] %s14
      %s16 = sshll.u32 [#allocation2], 4
      %s17 = int_to_ptr.vmem [resolvable:$true] %s16
      %22 = dma.hbm_to_vmem [thread:$0]  %s15, 32, %s17, [#allocation3], 32, 32, 2
    $region5: #{dqn_forward.1} parent=1 // pred_fallthru
      _
    // Predicated region
    $region6: #{dqn_forward.1} parent=1 // pred_check
      _
    $region7: #{dqn_forward.1} parent=1 // pred_check_branch
      %24 = sbr.rel (0) target = $region9
    $region8: #{dqn_forward.1} parent=1 // pred_region
      %26 = vsyncadd [#allocation6], 0
      %s27 = sshll.u32 %s1, 4
      %s28 = int_to_ptr.hbm [resolvable:$true] %s27
      %s29 = sshll.u32 [#allocation5], 4
      %s30 = int_to_ptr.vmem [resolvable:$true] %s29
      %35 = dma.hbm_to_vmem [thread:$0]  %s28, 4608, %s30, [#allocation6], 128, 128, 8
    $region9: #{dqn_forward.1} parent=1 // pred_fallthru
      _
    // Predicated region
    $region10: #{dqn_forward.1} parent=1 // pred_check
      _
    $region11: #{dqn_forward.1} parent=1 // pred_check_branch
      %37 = sbr.rel (0) target = $region13
    $region12: #{dqn_forward.1} parent=1 // pred_region
      %39 = dma.done [#allocation3], 128
    $region13: #{dqn_forward.1} parent=1 // pred_fallthru
      _
    // Predicated region
    $region14: #{dqn_forward.1} parent=1 // pred_check
      _
    $region15: #{dqn_forward.1} parent=1 // pred_check_branch
      %41 = sbr.rel (0) target = $region17
    $region16: #{dqn_forward.1} parent=1 // pred_region
      %43 = dma.done [#allocation6], 4608
    $region17: #{dqn_forward.1} parent=1 // pred_fallthru
      _
    %v44 = vld [vmem:[#allocation2] sm:$0xff]
    %v45 = vld [vmem:[#allocation5] sm:$0xf]
    %v46 = vld [vmem:[#allocation5 + $0x8] sm:$0x1]
    %v47 = vld [vmem:[#allocation5 + $0x10] sm:$0xff]
    %v48 = vld [vmem:[#allocation5 + $0x18] sm:$0xff]
    %v49 = vld [vmem:[#allocation5 + $0x20] sm:$0xff]
    %v50 = vld [vmem:[#allocation5 + $0x28] sm:$0xff]
    %v51 = vld [vmem:[#allocation5 + $0x30] sm:$0xff]
    %v52 = vld [vmem:[#allocation5 + $0x38] sm:$0xff]
    %v53 = vld [vmem:[#allocation5 + $0x40] sm:$0xff]
    %v54 = vld [vmem:[#allocation5 + $0x48] sm:$0xff]
    %v55 = vld [vmem:[#allocation5 + $0x50] sm:$0xff]
    %v56 = vld [vmem:[#allocation5 + $0x58] sm:$0xff]
    %v57 = vld [vmem:[#allocation5 + $0x60] sm:$0xff]
    %v58 = vld [vmem:[#allocation5 + $0x68] sm:$0xff]
    %v59 = vld [vmem:[#allocation5 + $0x70] sm:$0xff]
    %v60 = vld [vmem:[#allocation5 + $0x78] sm:$0xff]
    %v61 = vld [vmem:[#allocation5 + $0x80] sm:$0xff]
    %v62 = vld [vmem:[#allocation5 + $0x88] sm:$0xff]
    %v63 = vld [vmem:[#allocation5 + $0x90] sm:$0x1]
    %v64 = vld [vmem:[#allocation5 + $0x98] sm:$0xff]
    %v65 = vld [vmem:[#allocation5 + $0xa0] sm:$0xff]
    %v66 = vld [vmem:[#allocation5 + $0xa8] sm:$0xff]
    %v67 = vld [vmem:[#allocation5 + $0xb0] sm:$0xff]
    %v68 = vld [vmem:[#allocation5 + $0xb8] sm:$0xff]
    %v69 = vld [vmem:[#allocation5 + $0xc0] sm:$0xff]
    %v70 = vld [vmem:[#allocation5 + $0xc8] sm:$0xff]
    %v71 = vld [vmem:[#allocation5 + $0xd0] sm:$0xff]
    %v72 = vld [vmem:[#allocation5 + $0xd8] sm:$0xff]
    %v73 = vld [vmem:[#allocation5 + $0xe0] sm:$0xff]
    %v74 = vld [vmem:[#allocation5 + $0xe8] sm:$0xff]
    %v75 = vld [vmem:[#allocation5 + $0xf0] sm:$0xff]
    %v76 = vld [vmem:[#allocation5 + $0xf8] sm:$0xff]
    %v77 = vld [vmem:[#allocation5 + $0x100] sm:$0xff]
    %v78 = vld [vmem:[#allocation5 + $0x108] sm:$0xff]
    %v79 = vld [vmem:[#allocation5 + $0x110] sm:$0xff]
    %v80 = vld [vmem:[#allocation5 + $0x118] sm:$0x1]
    %v81 = vperm.slane %v46, 0
    %vm82 = vcmask 31744
    %v84 = vsel %vm82, %v44, 0
    %vm86 = vcmask 1043456
    %v88 = vsel %vm86, %v45, 0
    %90 = vmatpush.msra.mxu0 0.0
    %91 = vmatpush.msra.mxu0 0.0
    %92 = vmatpush.msra.mxu0 0.0
    %93 = vmatpush.msra.mxu0 0.0
    %94 = vmatpush.msra.mxu0 0.0
    %95 = vmatpush.msra.mxu0 0.0
    %96 = vmatpush.msra.mxu0 0.0
    %97 = vmatpush.msra.mxu0 0.0
    %98 = vmatpush.msra.mxu0 0.0
    %99 = vmatpush.msra.mxu0 0.0
    %100 = vmatpush.msra.mxu0 0.0
    %101 = vmatpush.msra.mxu0 0.0
    %102 = vmatpush.msra.mxu0 0.0
    %103 = vmatpush.msra.mxu0 0.0
    %104 = vmatpush.msra.mxu0 0.0
    %105 = vmatpush.msra.mxu0 %v88
    %106 = vmatmul.f32.gmra.mxu0 %v84
    %v107 = vpop.f32.mrf.mxu0
    %v108 = vadd.f32 %v81, %v107
    %109 = vdwg.mxu0
    %v110 = vmax.f32 %v108, 0.0
    %v111 = vperm.slane %v63, 0
    %112 = vmatpush.msra.mxu0 %v62
    %113 = vmatpush.msra.mxu0 %v61
    %114 = vmatpush.msra.mxu0 %v60
    %115 = vmatpush.msra.mxu0 %v59
    %116 = vmatpush.msra.mxu0 %v58
    %117 = vmatpush.msra.mxu0 %v57
    %118 = vmatpush.msra.mxu0 %v56
    %119 = vmatpush.msra.mxu0 %v55
    %120 = vmatpush.msra.mxu0 %v54
    %121 = vmatpush.msra.mxu0 %v53
    %122 = vmatpush.msra.mxu0 %v52
    %123 = vmatpush.msra.mxu0 %v51
    %124 = vmatpush.msra.mxu0 %v50
    %125 = vmatpush.msra.mxu0 %v49
    %126 = vmatpush.msra.mxu0 %v48
    %127 = vmatpush.msra.mxu0 %v47
    %128 = vmatmul.f32.gmra.mxu0 %v110
    %v129 = vpop.f32.mrf.mxu0
    %v130 = vadd.f32 %v111, %v129
    %131 = vdwg.mxu0
    %v132 = vmax.f32 %v130, 0.0
    %v133 = vperm.slane %v80, 0
    %134 = vmatpush.msra.mxu0 %v79
    %135 = vmatpush.msra.mxu0 %v78
    %136 = vmatpush.msra.mxu0 %v77
    %137 = vmatpush.msra.mxu0 %v76
    %138 = vmatpush.msra.mxu0 %v75
    %139 = vmatpush.msra.mxu0 %v74
    %140 = vmatpush.msra.mxu0 %v73
    %141 = vmatpush.msra.mxu0 %v72
    %142 = vmatpush.msra.mxu0 %v71
    %143 = vmatpush.msra.mxu0 %v70
    %144 = vmatpush.msra.mxu0 %v69
    %145 = vmatpush.msra.mxu0 %v68
    %146 = vmatpush.msra.mxu0 %v67
    %147 = vmatpush.msra.mxu0 %v66
    %148 = vmatpush.msra.mxu0 %v65
    %149 = vmatpush.msra.mxu0 %v64
    %150 = vmatmul.f32.gmra.mxu0 %v132
    %v151 = vpop.f32.mrf.mxu0
    %v152 = vadd.f32 %v133, %v151
    %153 = vdwg.mxu0
    %vm154 = vcmask 15360
    %155 = vst.msk [vmem:[#allocation7] sm:$0xff] %vm154, %v152
    // Predicated region
    $region18: #{dqn_forward.1} parent=1 // pred_check
      _
    $region19: #{dqn_forward.1} parent=1 // pred_check_branch
      %157 = sbr.rel (0) target = $region21
    $region20: #{dqn_forward.1} parent=1 // pred_region
      %159 = vsyncadd [#allocation4], 96
      %s160 = sshll.u32 [#allocation7], 4
      %s161 = int_to_ptr.vmem [resolvable:$true] %s160
      %s162 = sshll.u32 %s2, 4
      %s163 = int_to_ptr.hbm [resolvable:$true] %s162
      %168 = dma.vmem_to_hbm [thread:$0]  %s161, 32, %s163, [#allocation4], 32, 32, 2
    $region21: #{dqn_forward.1} parent=1 // pred_fallthru
      _
    // Predicated region
    $region22: #{dqn_forward.1} parent=1 // pred_check
      _
    $region23: #{dqn_forward.1} parent=1 // pred_check_branch
      %170 = sbr.rel (0) target = $region25
    $region24: #{dqn_forward.1} parent=1 // pred_region
      %172 = dma.done [#allocation4], 128
    $region25: #{dqn_forward.1} parent=1 // pred_fallthru
      _
    %173 = vsyncpa [#allocation3], 1
    %174 = vsyncpa [#allocation6], 1
    %175 = vsyncpa [#allocation4], 1

</llo_original>
